<compile_context>
chip_gen: v6e
topology: v6e:2x2x1
jax: 0.10.0
libtpu: 0.0.40
codegen_flags: <defaults>
</compile_context>

<pallas_src>
import functools

import jax
import jax.numpy as jnp
from jax import lax
from jax.experimental import pallas as pl
from jax.experimental.pallas import tpu as pltpu

LANES = 128
SUBLANES = 8            # f32 vreg sublane count (accumulator shape)
MAX_BLOCK_ROWS = 4096   # (4096, 128) f32 = 2 MiB per input per pipeline buffer


def _packed_sublanes(dtype) -> int:
    """Second-minor tile multiple for a dtype: 8 (f32), 16 (bf16), 32 (i8/fp8)."""
    return max(SUBLANES, 32 // jnp.dtype(dtype).itemsize)


def _rmsle_kernel(pred_ref, label_ref, out_ref, *, rows_total, block_rows,
                  blocks_per_shard, total_blocks):
    s = pl.program_id(0)             # megacore (parallel) axis
    j = pl.program_id(1)             # reduction (arbitrary) axis
    gb = s * blocks_per_shard + j    # global block index

    @pl.when(j == 0)
    def _():
        out_ref[...] = jnp.zeros_like(out_ref)

    p = pred_ref[...].astype(jnp.float32)
    t = label_ref[...].astype(jnp.float32)

    def accumulate(pp, tt):
        d = jnp.log1p(pp) - jnp.log1p(tt)        # log(x + 1) == log1p(x)
        sq = (d * d).reshape(block_rows // SUBLANES, SUBLANES, LANES)
        # Resident (8, 128) vreg partial sum; full reduce + sqrt in wrapper.
        out_ref[...] += jnp.sum(sq, axis=0)

    last_block = total_blocks - 1
    has_partial = (rows_total % block_rows) != 0   # static Python bool

    if has_partial:
        # Masked path: only the final (partial) block pays the iota/mask cost.
        @pl.when(gb == last_block)
        def _():
            row_ids = (lax.broadcasted_iota(jnp.int32, (block_rows, LANES), 0)
                       + last_block * block_rows)
            valid = row_ids < rows_total
            # Mask BEFORE log1p: the overhang reads unspecified VMEM that may
            # be <= -1 and would otherwise poison the accumulator with NaNs.
            # Lane padding within the last valid row is zeros from jnp.pad and
            # contributes log1p(0) - log1p(0) = 0, so a row-only mask suffices.
            accumulate(jnp.where(valid, p, 0.0), jnp.where(valid, t, 0.0))

        # Unmasked fast path for all full blocks; also skips the phantom step
        # of a ragged megacore split (its gb == total_blocks).
        @pl.when(gb < last_block)
        def _():
            accumulate(p, t)
    else:
        # No partial block: only skip phantom ragged-split steps.
        @pl.when(gb < total_blocks)
        def _():
            accumulate(p, t)


def rmsle_loss(pred, label):
    """RMSLE(pred, label) = sqrt(mean((log(pred + 1) - log(label + 1))**2))."""
    assert pred.shape == label.shape
    n_elems = pred.size

    # Flatten in native dtype; pad only to a multiple of 128 lanes (zeros are
    # harmless to the sum; partial last blocks are masked in-kernel).
    flat_p = jnp.ravel(pred)
    flat_t = jnp.ravel(label)
    pad = (-n_elems) % LANES
    if pad:
        flat_p = jnp.pad(flat_p, (0, pad))
        flat_t = jnp.pad(flat_t, (0, pad))

    rows = (n_elems + pad) // LANES
    p2d = flat_p.reshape(rows, LANES)
    t2d = flat_t.reshape(rows, LANES)

    # Block rows: as large as MAX_BLOCK_ROWS, rounded to the packed sublane
    # multiple of the native dtype (8 f32 / 16 bf16 / 32 int8).
    sub = max(_packed_sublanes(pred.dtype), _packed_sublanes(label.dtype))
    block_rows = min(MAX_BLOCK_ROWS, pl.cdiv(rows, sub) * sub)
    total_blocks = pl.cdiv(rows, block_rows)

    # Ragged 2-way megacore split whenever there is more than one block; the
    # possible phantom step is clamped in the index_map and skipped in-kernel.
    num_shards = 2 if total_blocks >= 2 else 1
    blocks_per_shard = pl.cdiv(total_blocks, num_shards)

    def in_index(s, j):
        return (jnp.minimum(s * blocks_per_shard + j, total_blocks - 1), 0)

    in_spec = pl.BlockSpec((block_rows, LANES), in_index)

    partials = pl.pallas_call(
        functools.partial(_rmsle_kernel,
                          rows_total=rows,
                          block_rows=block_rows,
                          blocks_per_shard=blocks_per_shard,
                          total_blocks=total_blocks),
        out_shape=jax.ShapeDtypeStruct((num_shards * SUBLANES, LANES),
                                       jnp.float32),
        grid_spec=pltpu.PrefetchScalarGridSpec(
            num_scalar_prefetch=0,
            grid=(num_shards, blocks_per_shard),
            in_specs=[in_spec, in_spec],
            out_specs=pl.BlockSpec((SUBLANES, LANES), lambda s, j: (s, 0)),
        ),
        compiler_params=pltpu.CompilerParams(
            dimension_semantics=("parallel", "arbitrary"),
        ),
    )(p2d, t2d)

    # Tiny epilogue: one cross-lane reduce of (num_shards*8, 128) + sqrt.
    return jnp.sqrt(jnp.sum(partials) / jnp.float32(n_elems))


if __name__ == "__main__":
    key = jax.random.PRNGKey(0)
    kp, kt = jax.random.split(key)

    # Small NCHW-like shapes; values kept positive (RMSLE domain: x + 1 > 0).
    shape = (2, 4, 16, 16)
    pred = jax.random.uniform(kp, shape, dtype=jnp.float32, minval=0.0, maxval=5.0)
    label = jax.random.uniform(kt, shape, dtype=jnp.float32, minval=0.0, maxval=5.0)

    loss = rmsle_loss(pred, label)
    jax.block_until_ready(loss)

    # Reference check in plain JAX.
    ref = jnp.sqrt(jnp.mean((jnp.log1p(pred) - jnp.log1p(label)) ** 2))
    assert jnp.allclose(loss, ref, rtol=1e-5, atol=1e-6), (loss, ref)

    print("KERNEL_OK")
</pallas_src>

<mosaic_0001>
module attributes {stable_mosaic.version = 11 : i64} {
  func.func @_rmsle_kernel(%arg0: i32, %arg1: i32, %arg2: memref<16x128xf32, #tpu.memory_space<vmem>>, %arg3: memref<16x128xf32, #tpu.memory_space<vmem>>, %arg4: memref<8x128xf32, #tpu.memory_space<vmem>>) attributes {dimension_semantics = [#tpu.dimension_semantics<parallel>, #tpu.dimension_semantics<arbitrary>], iteration_bounds = array<i64: 1, 1>, scalar_prefetch = 0 : i64, scratch_operands = 0 : i64, tpu.core_type = #tpu.core_type<tc>, window_params = [{transform_indices = @transform_0, window_bounds = array<i64: 16, 128>}, {transform_indices = @transform_1, window_bounds = array<i64: 16, 128>}, {transform_indices = @transform_2, window_bounds = array<i64: 8, 128>}]} {
    %c1_i32 = arith.constant 1 : i32
    %0 = arith.muli %arg0, %c1_i32 : i32
    %1 = arith.addi %0, %arg1 : i32
    %c0_i32 = arith.constant 0 : i32
    %2 = arith.cmpi eq, %arg1, %c0_i32 : i32
    %3 = arith.extui %2 : i1 to i32
    %c0_i32_0 = arith.constant 0 : i32
    %4 = arith.cmpi ne, %3, %c0_i32_0 : i32
    scf.if %4 {
      %cst = arith.constant 0.000000e+00 : f32
      %10 = vector.broadcast %cst : f32 to vector<8x128xf32>
      %c0_6 = arith.constant 0 : index
      %c0_7 = arith.constant 0 : index
      %11 = vector.load %arg4[%c0_6, %c0_7] : memref<8x128xf32, #tpu.memory_space<vmem>>, vector<8x128xf32>
      tpu.vector_store %arg4[%c0_6, %c0_7], %10 {strides = array<i32>} : memref<8x128xf32, #tpu.memory_space<vmem>>, vector<8x128xf32>,
    } else {
    }
    %c0 = arith.constant 0 : index
    %c0_1 = arith.constant 0 : index
    %5 = vector.load %arg2[%c0, %c0_1] : memref<16x128xf32, #tpu.memory_space<vmem>>, vector<16x128xf32>
    %c0_2 = arith.constant 0 : index
    %c0_3 = arith.constant 0 : index
    %6 = vector.load %arg3[%c0_2, %c0_3] : memref<16x128xf32, #tpu.memory_space<vmem>>, vector<16x128xf32>
    %c1_i32_4 = arith.constant 1 : i32
    %7 = arith.cmpi slt, %1, %c1_i32_4 : i32
    %8 = arith.extui %7 : i1 to i32
    %c0_i32_5 = arith.constant 0 : i32
    %9 = arith.cmpi ne, %8, %c0_i32_5 : i32
    scf.if %9 {
      %10 = math.log1p %5 : vector<16x128xf32>
      %11 = math.log1p %6 : vector<16x128xf32>
      %12 = arith.subf %10, %11 : vector<16x128xf32>
      %13 = arith.mulf %12, %12 : vector<16x128xf32>
      %14 = vector.shape_cast %13 : vector<16x128xf32> to vector<2x8x128xf32>
      %c0_6 = arith.constant 0 : index
      %c0_7 = arith.constant 0 : index
      %15 = vector.load %arg4[%c0_6, %c0_7] : memref<8x128xf32, #tpu.memory_space<vmem>>, vector<8x128xf32>
      %cst = arith.constant dense<0.000000e+00> : vector<8x128xf32>
      %16 = vector.multi_reduction <add>, %14, %cst [0] : vector<2x8x128xf32> to vector<8x128xf32>
      %17 = arith.addf %15, %16 : vector<8x128xf32>
      %c0_8 = arith.constant 0 : index
      %c0_9 = arith.constant 0 : index
      %18 = vector.load %arg4[%c0_8, %c0_9] : memref<8x128xf32, #tpu.memory_space<vmem>>, vector<8x128xf32>
      tpu.vector_store %arg4[%c0_8, %c0_9], %17 {strides = array<i32>} : memref<8x128xf32, #tpu.memory_space<vmem>>, vector<8x128xf32>,
    } else {
    }
    return
  }
  func.func @transform_0(%arg0: i32, %arg1: i32) -> (i32, i32) {
    %c1_i32 = arith.constant 1 : i32
    %0 = arith.muli %arg0, %c1_i32 : i32
    %1 = arith.addi %0, %arg1 : i32
    %c0_i32 = arith.constant 0 : i32
    %2 = arith.minsi %1, %c0_i32 : i32
    %c0_i32_0 = arith.constant 0 : i32
    %c0_i32_1 = arith.constant 0 : i32
    return %2, %c0_i32_0 : i32, i32
  }
  func.func @transform_1(%arg0: i32, %arg1: i32) -> (i32, i32) {
    %c1_i32 = arith.constant 1 : i32
    %0 = arith.muli %arg0, %c1_i32 : i32
    %1 = arith.addi %0, %arg1 : i32
    %c0_i32 = arith.constant 0 : i32
    %2 = arith.minsi %1, %c0_i32 : i32
    %c0_i32_0 = arith.constant 0 : i32
    %c0_i32_1 = arith.constant 0 : i32
    return %2, %c0_i32_0 : i32, i32
  }
  func.func @transform_2(%arg0: i32, %arg1: i32) -> (i32, i32) {
    %c0_i32 = arith.constant 0 : i32
    %c0_i32_0 = arith.constant 0 : i32
    return %arg0, %c0_i32 : i32, i32
  }
}

</mosaic_0001>

<llo_original>
// kernel: tpu_custom_call.1
$region0: #{tpu_custom_call.1}
  #allocation0 [shape = 'u32[]', space=smem, size = 0x4, offset = 0x4, fixed_abs, tag = 'smem constant byte address 0x4 - core index']
  #allocation1 [shape = 'u32[144,128]{1,0:T(1,128)}', space=vmem, size = 0x12000, scoped, tag = 'internal scratch']
  %s0 = inlined_call_operand.hbm [shape: f32[16,128], index: 0, kind: input, shape index: {}]
  %s1 = inlined_call_operand.hbm [shape: f32[16,128], index: 1, kind: input, shape index: {}]
  %s2 = inlined_call_operand.hbm [shape: f32[8,128], index: 2, kind: output, shape index: {}]
  %s3 = sld [smem:[#allocation0]]
  $region34: #{tpu_custom_call.1} parent=0
    _
  %s5 = ssub.s32 1, %s3
  %s6 = scalar_select 0, %s5, %s3
  $region1: #{tpu_custom_call.1} parent=0
    #allocation2 [shape = 'u8[8192]{0}', space=vmem, size = 0x2000, scoped, tag = 'input window, operand 0, single buffered']
    #allocation3 [shape = 's32[1]{0}', space=sflag, size = 0x4, scoped, tag = 'scoped memory for tpu_custom_call.1']
    #allocation4 [shape = 's32[1]{0}', space=sflag, size = 0x4, scoped, tag = 'scoped memory for tpu_custom_call.1']
    #allocation5 [shape = 'u8[8192]{0}', space=vmem, size = 0x2000, scoped, tag = 'input window, operand 1, single buffered']
    #allocation6 [shape = 's32[1]{0}', space=sflag, size = 0x4, scoped, tag = 'scoped memory for tpu_custom_call.1']
    #allocation7 [shape = 'u8[4096]{0}', space=vmem, size = 0x1000, scoped, tag = 'output window, operand 0, single buffered']
    %7 = vsyncpa [#allocation3], 0
    %8 = vsyncpa [#allocation6], 0
    %9 = vsyncpa [#allocation4], 0
    // Predicated region
    $region2: #{tpu_custom_call.1} parent=1 // pred_check
      _
    $region3: #{tpu_custom_call.1} parent=1 // pred_check_branch
      %11 = sbr.rel (0) target = $region5
    $region4: #{tpu_custom_call.1} parent=1 // pred_region
      %s12 = sadd.s32 0, 0
      %p13 = scmp.lt.s32.totalorder %s12, 0
      %s14 = scalar_select %p13, %s12, 0
      %s15 = smul.u32 2, %s14
      %s17 = ssub.s32 256, 256
      %18 = vsyncadd [#allocation3], %s17
      %s19 = smul.addr %s15, 128
      %s20 = scalar_lea.hbm %s0, %s19
      %s21 = sshll.u32 [#allocation2], 4
      %s22 = int_to_ptr.vmem [resolvable:$true] %s21
      %27 = dma.hbm_to_vmem [thread:$0]  %s20, 256, %s22, [#allocation3], 128, 128, 8
    $region5: #{tpu_custom_call.1} parent=1 // pred_fallthru
      _
    // Predicated region
    $region6: #{tpu_custom_call.1} parent=1 // pred_check
      _
    $region7: #{tpu_custom_call.1} parent=1 // pred_check_branch
      %29 = sbr.rel (0) target = $region9
    $region8: #{tpu_custom_call.1} parent=1 // pred_region
      %s30 = sadd.s32 0, 0
      %p31 = scmp.lt.s32.totalorder %s30, 0
      %s32 = scalar_select %p31, %s30, 0
      %s33 = smul.u32 2, %s32
      %s35 = ssub.s32 256, 256
      %36 = vsyncadd [#allocation6], %s35
      %s37 = smul.addr %s33, 128
      %s38 = scalar_lea.hbm %s1, %s37
      %s39 = sshll.u32 [#allocation5], 4
      %s40 = int_to_ptr.vmem [resolvable:$true] %s39
      %45 = dma.hbm_to_vmem [thread:$0]  %s38, 256, %s40, [#allocation6], 128, 128, 8
    $region9: #{tpu_custom_call.1} parent=1 // pred_fallthru
      _
    // Predicated region
    $region10: #{tpu_custom_call.1} parent=1 // pred_check
      _
    $region11: #{tpu_custom_call.1} parent=1 // pred_check_branch
      %47 = sbr.rel (0) target = $region13
    $region12: #{tpu_custom_call.1} parent=1 // pred_region
      %48 = dma.done [#allocation3], 256
    $region13: #{tpu_custom_call.1} parent=1 // pred_fallthru
      _
    // Predicated region
    $region14: #{tpu_custom_call.1} parent=1 // pred_check
      _
    $region15: #{tpu_custom_call.1} parent=1 // pred_check_branch
      %50 = sbr.rel (0) target = $region17
    $region16: #{tpu_custom_call.1} parent=1 // pred_region
      %51 = dma.done [#allocation6], 256
    $region17: #{tpu_custom_call.1} parent=1 // pred_fallthru
      _
    %s52 = sadd.s32 0, 0
    %p53 = scmp.lt.s32.totalorder %s52, 0
    %s54 = scalar_select %p53, %s52, 0
    %s55 = smul.u32 2, %s54
    %s56 = sadd.s32 0, 0
    %p57 = scmp.lt.s32.totalorder %s56, 0
    %s58 = scalar_select %p57, %s56, 0
    %s59 = smul.u32 2, %s58
    %s60 = sadd.s32 0, 0
    %p61 = scmp.eq.s32.totalorder 0, 0
    // Predicated region
    $region18: #{tpu_custom_call.1} parent=1 // pred_check
      %p62 = pneg %p61
    $region19: #{tpu_custom_call.1} parent=1 // pred_check_branch
      %64 = sbr.rel (%p62) target = $region21
    $region20: #{tpu_custom_call.1} parent=1 // pred_region
      %65 = vst [vmem:[#allocation7] sm:$0xff] 0.0
    $region21: #{tpu_custom_call.1} parent=1 // pred_fallthru
      _
    %v66 = vld [vmem:[#allocation2] sm:$0xff]
    %v67 = vld [vmem:[#allocation2 + $0x8] sm:$0xff]
    %v68 = vld [vmem:[#allocation5] sm:$0xff]
    %v69 = vld [vmem:[#allocation5 + $0x8] sm:$0xff]
    %p70 = scmp.lt.s32.totalorder %s60, 1
    // Predicated region
    $region22: #{tpu_custom_call.1} parent=1 // pred_check
      %p71 = pneg %p70
    $region23: #{tpu_custom_call.1} parent=1 // pred_check_branch
      %73 = sbr.rel (%p71) target = $region25
    $region24: #{tpu_custom_call.1} parent=1 // pred_region
      %v74 = vadd.f32 %v66, 1.0
      %v75 = vlog2.pop %v74
      %v76 = vmul.f32 %v75, 0.6931472
      %v77 = vmul.f32 -0.5, %v66
      %v78 = vadd.f32 %v77, 1.0
      %v79 = vmul.f32 %v78, %v66
      %v80 = vand.u32 2147483647, %v66
      %vm81 = vcmp.lt.f32.partialorder %v80, 0.0004427343
      %v82 = vsel %vm81, %v79, %v76
      %v83 = vadd.f32 %v67, 1.0
      %v84 = vlog2.pop %v83
      %v85 = vmul.f32 %v84, 0.6931472
      %v86 = vmul.f32 -0.5, %v67
      %v87 = vadd.f32 %v86, 1.0
      %v88 = vmul.f32 %v87, %v67
      %v89 = vand.u32 2147483647, %v67
      %vm90 = vcmp.lt.f32.partialorder %v89, 0.0004427343
      %v91 = vsel %vm90, %v88, %v85
      %v92 = vadd.f32 %v68, 1.0
      %v93 = vlog2.pop %v92
      %v94 = vmul.f32 %v93, 0.6931472
      %v95 = vmul.f32 -0.5, %v68
      %v96 = vadd.f32 %v95, 1.0
      %v97 = vmul.f32 %v96, %v68
      %v98 = vand.u32 2147483647, %v68
      %vm99 = vcmp.lt.f32.partialorder %v98, 0.0004427343
      %v100 = vsel %vm99, %v97, %v94
      %v101 = vadd.f32 %v69, 1.0
      %v102 = vlog2.pop %v101
      %v103 = vmul.f32 %v102, 0.6931472
      %v104 = vmul.f32 -0.5, %v69
      %v105 = vadd.f32 %v104, 1.0
      %v106 = vmul.f32 %v105, %v69
      %v107 = vand.u32 2147483647, %v69
      %vm108 = vcmp.lt.f32.partialorder %v107, 0.0004427343
      %v109 = vsel %vm108, %v106, %v103
      %v110 = vsub.f32 %v82, %v100
      %v111 = vsub.f32 %v91, %v109
      %v112 = vmul.f32 %v110, %v110
      %v113 = vmul.f32 %v111, %v111
      %v114 = vld [vmem:[#allocation7] sm:$0xff]
      %v115 = vadd.f32 %v112, %v113
      %v116 = vadd.f32 %v114, %v115
      %117 = vst [vmem:[#allocation7] sm:$0xff] %v116
    $region25: #{tpu_custom_call.1} parent=1 // pred_fallthru
      _
    // Predicated region
    $region26: #{tpu_custom_call.1} parent=1 // pred_check
      _
    $region27: #{tpu_custom_call.1} parent=1 // pred_check_branch
      %119 = sbr.rel (0) target = $region29
    $region28: #{tpu_custom_call.1} parent=1 // pred_region
      %s121 = ssub.s32 128, 128
      %122 = vsyncadd [#allocation4], %s121
      %s124 = sshll.u32 [#allocation7], 4
      %s125 = int_to_ptr.vmem [resolvable:$true] %s124
      %127 = dma.vmem_to_hbm [thread:$0]  %s125, 128, %s2, [#allocation4]
    $region29: #{tpu_custom_call.1} parent=1 // pred_fallthru
      _
    // Predicated region
    $region30: #{tpu_custom_call.1} parent=1 // pred_check
      _
    $region31: #{tpu_custom_call.1} parent=1 // pred_check_branch
      %129 = sbr.rel (0) target = $region33
    $region32: #{tpu_custom_call.1} parent=1 // pred_region
      %130 = dma.done [#allocation4], 128
    $region33: #{tpu_custom_call.1} parent=1 // pred_fallthru
      _
    %131 = vsyncpa [#allocation3], 1
    %132 = vsyncpa [#allocation6], 1
    %133 = vsyncpa [#allocation4], 1

</llo_original>
